<compile_context>
chip_gen: v5e
topology: v5e:2x2
jax: 0.10.0
libtpu: 0.0.40
codegen_flags: <defaults>
</compile_context>

<pallas_src>
import functools

import jax
import jax.numpy as jnp
from jax import lax
from jax.experimental import pallas as pl
from jax.experimental.pallas import tpu as pltpu


# ----------------------------------------------------------------------------
# Pallas kernel: full Classifer forward for ONE image (grid axis = batch).
# ----------------------------------------------------------------------------
def _classifier_kernel(
    x_ref,                      # (1, C, FB)  zero-padded flat plane on lanes
    mask_ref,                   # (1, FB)     1.0 at interior pixels, 0.0 at guards/tail
    dw1_ref, b1_ref,            # (C, 9), (C, 1)   BN scale folded into taps
    pw1_ref, b2_ref,            # (C, C) [mxu dtype], (C, 1)
    dw2_ref, b3_ref,            # (C, 9), (C, 1)
    pw2_ref, b4_ref,            # (C, C) [mxu dtype], (C, 1)
    wc_ref, bc_ref,             # (NCp, C) [mxu dtype], (NCp, 1)
    o_ref,                      # (1, NCp, FB)
    *, wp, mxu_dtype,           # padded image width (W + 2), matmul dtype (static)
):
    FB = x_ref.shape[-1]

    def depthwise3x3(y, dw):
        # Factored 3x3: 2 row rolls + 2 column rolls = 4 XLU rolls (was 8).
        # All rolls are circular within the per-image block; interior taps never
        # wrap (1-pixel guard ring) and non-interior lanes are masked later.
        up = pltpu.roll(y, wp % FB, axis=1)            # up[q] = y[q - wp]  (kh = 0)
        dn = pltpu.roll(y, (-wp) % FB, axis=1)         # dn[q] = y[q + wp]  (kh = 2)
        t0 = up * dw[:, 0:1] + y * dw[:, 3:4] + dn * dw[:, 6:7]   # kw = 0 column
        t1 = up * dw[:, 1:2] + y * dw[:, 4:5] + dn * dw[:, 7:8]   # kw = 1 column
        t2 = up * dw[:, 2:3] + y * dw[:, 5:6] + dn * dw[:, 8:9]   # kw = 2 column
        return (pltpu.roll(t0, 1, axis=1)              # acc[p] += t0[p - 1]
                + t1
                + pltpu.roll(t2, (-1) % FB, axis=1))   # acc[p] += t2[p + 1]

    x = x_ref[0]                 # (C, FB)
    mask = mask_ref[...]         # (1, FB), broadcasts over channels
    dw1 = dw1_ref[...]           # hoisted tap loads (no per-tap re-slices of the ref)
    dw2 = dw2_ref[...]

    # ---------------- dsconv1 ----------------
    y = depthwise3x3(x, dw1)
    y = jnp.maximum(y + b1_ref[...], 0.0)                                   # BN bias + ReLU
    y = jnp.dot(pw1_ref[...], y.astype(mxu_dtype),
                preferred_element_type=jnp.float32)                         # 1x1 conv (MXU)
    y = jnp.maximum(y + b2_ref[...], 0.0)

    # re-zero guard / tail lanes so they act as true zero padding for dsconv2
    y = y * mask

    # ---------------- dsconv2 ----------------
    y = depthwise3x3(y, dw2)
    y = jnp.maximum(y + b3_ref[...], 0.0)
    y = jnp.dot(pw2_ref[...], y.astype(mxu_dtype),
                preferred_element_type=jnp.float32)
    y = jnp.maximum(y + b4_ref[...], 0.0)

    # ---------------- final 1x1 conv (with bias) ----------------
    out = jnp.dot(wc_ref[...], y.astype(mxu_dtype),
                  preferred_element_type=jnp.float32) + bc_ref[...]
    o_ref[0] = out.astype(o_ref.dtype)       # lane-dense store (FB is a multiple of 128)


# ----------------------------------------------------------------------------
# Wrapper: NCHW in / NCHW out.  Folds BN into weights, minimal relayout.
# ----------------------------------------------------------------------------
def classifier_pallas(x_nchw, params, *, mxu_dtype=jnp.bfloat16):
    (dw1, s1, b1, pw1, s2, b2,
     dw2, s3, b3, pw2, s4, b4,
     wc, bc) = params

    N, C, H, W = x_nchw.shape
    NC = wc.shape[1]
    Hp, Wp = H + 2, W + 2
    FB = ((Hp * Wp + 127) // 128) * 128           # per-image flat block, lane aligned
    NCp = max(8, ((NC + 7) // 8) * 8)             # pad classes to a full sublane tile
    f32 = jnp.float32

    # ---- fold eval-mode BN scales into conv weights (once, plain JAX) ----
    dw1_f = (dw1 * s1[None, None, :]).reshape(9, C).T.astype(f32)    # (C, 9) f32 (VPU)
    dw2_f = (dw2 * s3[None, None, :]).reshape(9, C).T.astype(f32)
    pw1_t = (pw1 * s2[None, :]).T.astype(mxu_dtype)                  # (Cout, Cin) MXU dtype
    pw2_t = (pw2 * s4[None, :]).T.astype(mxu_dtype)
    b1c = b1.reshape(C, 1).astype(f32)
    b2c = b2.reshape(C, 1).astype(f32)
    b3c = b3.reshape(C, 1).astype(f32)
    b4c = b4.reshape(C, 1).astype(f32)
    wc_t = jnp.zeros((NCp, C), f32).at[:NC].set(wc.T.astype(f32)).astype(mxu_dtype)
    bc_c = jnp.zeros((NCp, 1), f32).at[:NC, 0].set(bc.astype(f32))

    # ---- input relayout: NCHW -> (N, C, FB); no transpose, batch indexed by grid ----
    xp = jnp.pad(x_nchw.astype(f32), ((0, 0), (0, 0), (1, 1), (1, 1)))   # 1-px guard ring
    xp = xp.reshape(N, C, Hp * Wp)
    x_flat = jnp.pad(xp, ((0, 0), (0, 0), (0, FB - Hp * Wp)))            # lane-align tail
    # TODO(synk): at real Fast-SCNN sizes, take NCHW straight from HBM with
    # memory_space=pl.ANY and DMA rows into a pre-zeroed VMEM scratch inside the
    # kernel (padding for free), and split FB into masked row bands if one image
    # exceeds the per-step VMEM budget.

    # ---- interior mask (1 at valid pixels, 0 at guards and alignment tail) ----
    m = jnp.zeros((Hp, Wp), f32).at[1:H + 1, 1:W + 1].set(1.0).reshape(Hp * Wp)
    mask = jnp.pad(m, (0, FB - Hp * Wp)).reshape(1, FB)

    kernel = functools.partial(_classifier_kernel, wp=Wp, mxu_dtype=mxu_dtype)
    const2 = lambda n: (0, 0)       # weights/biases stay resident across the batch grid

    out_flat = pl.pallas_call(
        kernel,
        out_shape=jax.ShapeDtypeStruct((N, NCp, FB), f32),
        grid=(N,),
        in_specs=[
            pl.BlockSpec((1, C, FB), lambda n: (n, 0, 0)),   # x: one image per step
            pl.BlockSpec((1, FB), const2),                   # mask (shared)
            pl.BlockSpec((C, 9), const2), pl.BlockSpec((C, 1), const2),
            pl.BlockSpec((C, C), const2), pl.BlockSpec((C, 1), const2),
            pl.BlockSpec((C, 9), const2), pl.BlockSpec((C, 1), const2),
            pl.BlockSpec((C, C), const2), pl.BlockSpec((C, 1), const2),
            pl.BlockSpec((NCp, C), const2), pl.BlockSpec((NCp, 1), const2),
        ],
        out_specs=pl.BlockSpec((1, NCp, FB), lambda n: (n, 0, 0)),
        compiler_params=pltpu.CompilerParams(
            dimension_semantics=("parallel",),               # v7x: 2 TCs split the batch
            vmem_limit_bytes=48 * 1024 * 1024,               # > default scoped, < v7x 64 MiB
        ),
    )(x_flat, mask, dw1_f, b1c, pw1_t, b2c, dw2_f, b3c, pw2_t, b4c, wc_t, bc_c)

    # ---- extract interior pixels, back to NCHW ----
    out = out_flat[:, :NC, :Hp * Wp].reshape(N, NC, Hp, Wp)[:, :, 1:H + 1, 1:W + 1]
    return out


# ----------------------------------------------------------------------------
# Deterministic synthetic parameters (eval-mode BN pre-folded to scale/bias).
# ----------------------------------------------------------------------------
def make_params(key, C, NC, eps=1e-5):
    ks = jax.random.split(key, 32)
    ki = iter(range(32))

    def nrm(shape, scale=0.1):
        return (scale * jax.random.normal(ks[next(ki)], shape)).astype(jnp.float32)

    def bn_fold():
        gamma = jax.random.uniform(ks[next(ki)], (C,), minval=0.5, maxval=1.5)
        beta = nrm((C,))
        mean = nrm((C,))
        var = jax.random.uniform(ks[next(ki)], (C,), minval=0.5, maxval=1.5)
        scale = gamma / jnp.sqrt(var + eps)
        bias = beta - mean * scale
        return scale.astype(jnp.float32), bias.astype(jnp.float32)

    dw1 = nrm((3, 3, C));  s1, b1 = bn_fold()
    pw1 = nrm((C, C));     s2, b2 = bn_fold()
    dw2 = nrm((3, 3, C));  s3, b3 = bn_fold()
    pw2 = nrm((C, C));     s4, b4 = bn_fold()
    wc = nrm((C, NC))
    bc = nrm((NC,))
    return (dw1, s1, b1, pw1, s2, b2, dw2, s3, b3, pw2, s4, b4, wc, bc)


# ----------------------------------------------------------------------------
# Pure-JAX reference (NCHW, matches the PyTorch forward in eval mode).
# ----------------------------------------------------------------------------
def classifier_ref(x, params):
    (dw1, s1, b1, pw1, s2, b2,
     dw2, s3, b3, pw2, s4, b4,
     wc, bc) = params
    dn = ('NCHW', 'OIHW', 'NCHW')
    C = x.shape[1]

    def aff(y, s, b):
        return jnp.maximum(y * s.reshape(1, -1, 1, 1) + b.reshape(1, -1, 1, 1), 0.0)

    def dsconv(y, dw, sa, ba, pw, sb, bb):
        w_dw = jnp.transpose(dw, (2, 0, 1))[:, None, :, :]      # (C,1,3,3)
        y = lax.conv_general_dilated(y, w_dw, (1, 1), ((1, 1), (1, 1)),
                                     feature_group_count=C, dimension_numbers=dn)
        y = aff(y, sa, ba)
        w_pw = jnp.transpose(pw, (1, 0))[:, :, None, None]      # (Cout,Cin,1,1)
        y = lax.conv_general_dilated(y, w_pw, (1, 1), 'VALID', dimension_numbers=dn)
        return aff(y, sb, bb)

    y = dsconv(x, dw1, s1, b1, pw1, s2, b2)
    y = dsconv(y, dw2, s3, b3, pw2, s4, b4)
    w_c = jnp.transpose(wc, (1, 0))[:, :, None, None]
    y = lax.conv_general_dilated(y, w_c, (1, 1), 'VALID', dimension_numbers=dn)
    return y + bc.reshape(1, -1, 1, 1)


if __name__ == "__main__":
    N, C, H, W = 2, 8, 16, 16          # dw_channels = 8
    NC = 4                             # num_classes = 4

    key = jax.random.PRNGKey(0)
    kx, kp = jax.random.split(key)
    x = jax.random.normal(kx, (N, C, H, W), dtype=jnp.float32)
    params = make_params(kp, C, NC)

    ref = jax.block_until_ready(classifier_ref(x, params))

    # f32 matmul path: tight correctness check against the XLA reference.
    out_f32 = jax.block_until_ready(classifier_pallas(x, params, mxu_dtype=jnp.float32))
    assert out_f32.shape == (N, NC, H, W), out_f32.shape
    err_f32 = float(jnp.max(jnp.abs(out_f32 - ref)))
    assert jnp.allclose(out_f32, ref, atol=2e-4, rtol=2e-4), err_f32

    # bf16 MXU path (production config): looser tolerance.
    out_bf16 = jax.block_until_ready(classifier_pallas(x, params, mxu_dtype=jnp.bfloat16))
    err_bf16 = float(jnp.max(jnp.abs(out_bf16 - ref)))
    assert jnp.allclose(out_bf16, ref, atol=2e-2, rtol=2e-2), err_bf16

    print("KERNEL_OK")
</pallas_src>

<mosaic_0001>
module attributes {stable_mosaic.version = 11 : i64} {
  func.func @_classifier_kernel(%arg0: i32, %arg1: memref<1x8x384xf32, #tpu.memory_space<vmem>>, %arg2: memref<1x384xf32, #tpu.memory_space<vmem>>, %arg3: memref<8x9xf32, #tpu.memory_space<vmem>>, %arg4: memref<8x1xf32, #tpu.memory_space<vmem>>, %arg5: memref<8x8xf32, #tpu.memory_space<vmem>>, %arg6: memref<8x1xf32, #tpu.memory_space<vmem>>, %arg7: memref<8x9xf32, #tpu.memory_space<vmem>>, %arg8: memref<8x1xf32, #tpu.memory_space<vmem>>, %arg9: memref<8x8xf32, #tpu.memory_space<vmem>>, %arg10: memref<8x1xf32, #tpu.memory_space<vmem>>, %arg11: memref<8x8xf32, #tpu.memory_space<vmem>>, %arg12: memref<8x1xf32, #tpu.memory_space<vmem>>, %arg13: memref<1x8x384xf32, #tpu.memory_space<vmem>>) attributes {dimension_semantics = [#tpu.dimension_semantics<parallel>], iteration_bounds = array<i64: 2>, scalar_prefetch = 0 : i64, scratch_operands = 0 : i64, tpu.core_type = #tpu.core_type<tc>, window_params = [{transform_indices = @transform_0, window_bounds = array<i64: 1, 8, 384>}, {pipeline_mode = #tpu.pipeline_mode<synchronous>, transform_indices = @transform_1, window_bounds = array<i64: 1, 384>}, {pipeline_mode = #tpu.pipeline_mode<synchronous>, transform_indices = @transform_2, window_bounds = array<i64: 8, 9>}, {pipeline_mode = #tpu.pipeline_mode<synchronous>, transform_indices = @transform_3, window_bounds = array<i64: 8, 1>}, {pipeline_mode = #tpu.pipeline_mode<synchronous>, transform_indices = @transform_4, window_bounds = array<i64: 8, 8>}, {pipeline_mode = #tpu.pipeline_mode<synchronous>, transform_indices = @transform_5, window_bounds = array<i64: 8, 1>}, {pipeline_mode = #tpu.pipeline_mode<synchronous>, transform_indices = @transform_6, window_bounds = array<i64: 8, 9>}, {pipeline_mode = #tpu.pipeline_mode<synchronous>, transform_indices = @transform_7, window_bounds = array<i64: 8, 1>}, {pipeline_mode = #tpu.pipeline_mode<synchronous>, transform_indices = @transform_8, window_bounds = array<i64: 8, 8>}, {pipeline_mode = #tpu.pipeline_mode<synchronous>, transform_indices = @transform_9, window_bounds = array<i64: 8, 1>}, {pipeline_mode = #tpu.pipeline_mode<synchronous>, transform_indices = @transform_10, window_bounds = array<i64: 8, 8>}, {pipeline_mode = #tpu.pipeline_mode<synchronous>, transform_indices = @transform_11, window_bounds = array<i64: 8, 1>}, {transform_indices = @transform_12, window_bounds = array<i64: 1, 8, 384>}]} {
    %c0 = arith.constant 0 : index
    %c0_0 = arith.constant 0 : index
    %c0_1 = arith.constant 0 : index
    %0 = vector.load %arg1[%c0, %c0_0, %c0_1] : memref<1x8x384xf32, #tpu.memory_space<vmem>>, vector<1x8x384xf32>
    %1 = vector.shape_cast %0 : vector<1x8x384xf32> to vector<8x384xf32>
    %c0_2 = arith.constant 0 : index
    %c0_3 = arith.constant 0 : index
    %2 = vector.load %arg2[%c0_2, %c0_3] : memref<1x384xf32, #tpu.memory_space<vmem>>, vector<1x384xf32>
    %c0_4 = arith.constant 0 : index
    %c0_5 = arith.constant 0 : index
    %3 = vector.load %arg3[%c0_4, %c0_5] : memref<8x9xf32, #tpu.memory_space<vmem>>, vector<8x9xf32>
    %c0_6 = arith.constant 0 : index
    %c0_7 = arith.constant 0 : index
    %4 = vector.load %arg7[%c0_6, %c0_7] : memref<8x9xf32, #tpu.memory_space<vmem>>, vector<8x9xf32>
    %c18_i32 = arith.constant 18 : i32
    %5 = tpu.dynamic_rotate %1 by %c18_i32 dim 1 : vector<8x384xf32>, i32 -> vector<8x384xf32>
    %c366_i32 = arith.constant 366 : i32
    %6 = tpu.dynamic_rotate %1 by %c366_i32 dim 1 : vector<8x384xf32>, i32 -> vector<8x384xf32>
    %7 = vector.extract_strided_slice %3 {offsets = [0, 0], sizes = [8, 1], strides = [1, 1]} : vector<8x9xf32> to vector<8x1xf32>
    %8 = vector.broadcast %7 : vector<8x1xf32> to vector<8x384xf32>
    %9 = arith.mulf %5, %8 : vector<8x384xf32>
    %10 = vector.extract_strided_slice %3 {offsets = [0, 3], sizes = [8, 1], strides = [1, 1]} : vector<8x9xf32> to vector<8x1xf32>
    %11 = vector.broadcast %10 : vector<8x1xf32> to vector<8x384xf32>
    %12 = arith.mulf %1, %11 : vector<8x384xf32>
    %13 = arith.addf %9, %12 : vector<8x384xf32>
    %14 = vector.extract_strided_slice %3 {offsets = [0, 6], sizes = [8, 1], strides = [1, 1]} : vector<8x9xf32> to vector<8x1xf32>
    %15 = vector.broadcast %14 : vector<8x1xf32> to vector<8x384xf32>
    %16 = arith.mulf %6, %15 : vector<8x384xf32>
    %17 = arith.addf %13, %16 : vector<8x384xf32>
    %18 = vector.extract_strided_slice %3 {offsets = [0, 1], sizes = [8, 1], strides = [1, 1]} : vector<8x9xf32> to vector<8x1xf32>
    %19 = vector.broadcast %18 : vector<8x1xf32> to vector<8x384xf32>
    %20 = arith.mulf %5, %19 : vector<8x384xf32>
    %21 = vector.extract_strided_slice %3 {offsets = [0, 4], sizes = [8, 1], strides = [1, 1]} : vector<8x9xf32> to vector<8x1xf32>
    %22 = vector.broadcast %21 : vector<8x1xf32> to vector<8x384xf32>
    %23 = arith.mulf %1, %22 : vector<8x384xf32>
    %24 = arith.addf %20, %23 : vector<8x384xf32>
    %25 = vector.extract_strided_slice %3 {offsets = [0, 7], sizes = [8, 1], strides = [1, 1]} : vector<8x9xf32> to vector<8x1xf32>
    %26 = vector.broadcast %25 : vector<8x1xf32> to vector<8x384xf32>
    %27 = arith.mulf %6, %26 : vector<8x384xf32>
    %28 = arith.addf %24, %27 : vector<8x384xf32>
    %29 = vector.extract_strided_slice %3 {offsets = [0, 2], sizes = [8, 1], strides = [1, 1]} : vector<8x9xf32> to vector<8x1xf32>
    %30 = vector.broadcast %29 : vector<8x1xf32> to vector<8x384xf32>
    %31 = arith.mulf %5, %30 : vector<8x384xf32>
    %32 = vector.extract_strided_slice %3 {offsets = [0, 5], sizes = [8, 1], strides = [1, 1]} : vector<8x9xf32> to vector<8x1xf32>
    %33 = vector.broadcast %32 : vector<8x1xf32> to vector<8x384xf32>
    %34 = arith.mulf %1, %33 : vector<8x384xf32>
    %35 = arith.addf %31, %34 : vector<8x384xf32>
    %36 = vector.extract_strided_slice %3 {offsets = [0, 8], sizes = [8, 1], strides = [1, 1]} : vector<8x9xf32> to vector<8x1xf32>
    %37 = vector.broadcast %36 : vector<8x1xf32> to vector<8x384xf32>
    %38 = arith.mulf %6, %37 : vector<8x384xf32>
    %39 = arith.addf %35, %38 : vector<8x384xf32>
    %c1_i32 = arith.constant 1 : i32
    %40 = tpu.dynamic_rotate %17 by %c1_i32 dim 1 : vector<8x384xf32>, i32 -> vector<8x384xf32>
    %41 = arith.addf %40, %28 : vector<8x384xf32>
    %c383_i32 = arith.constant 383 : i32
    %42 = tpu.dynamic_rotate %39 by %c383_i32 dim 1 : vector<8x384xf32>, i32 -> vector<8x384xf32>
    %43 = arith.addf %41, %42 : vector<8x384xf32>
    %c0_8 = arith.constant 0 : index
    %c0_9 = arith.constant 0 : index
    %44 = vector.load %arg4[%c0_8, %c0_9] : memref<8x1xf32, #tpu.memory_space<vmem>>, vector<8x1xf32>
    %45 = vector.broadcast %44 : vector<8x1xf32> to vector<8x384xf32>
    %46 = arith.addf %43, %45 : vector<8x384xf32>
    %cst = arith.constant 0.000000e+00 : f32
    %47 = vector.broadcast %cst : f32 to vector<8x384xf32>
    %48 = arith.maximumf %46, %47 : vector<8x384xf32>
    %c0_10 = arith.constant 0 : index
    %c0_11 = arith.constant 0 : index
    %49 = vector.load %arg5[%c0_10, %c0_11] : memref<8x8xf32, #tpu.memory_space<vmem>>, vector<8x8xf32>
    %cst_12 = arith.constant dense<0.000000e+00> : vector<8x384xf32>
    %50 = tpu.matmul %49, %48, %cst_12 {dimension_numbers = #tpu.dot_dimension_numbers<[1], [0], [0], [1], [0, 0, 1, 1], [], []>} : vector<8x8xf32>, vector<8x384xf32>, vector<8x384xf32> -> vector<8x384xf32>
    %c0_13 = arith.constant 0 : index
    %c0_14 = arith.constant 0 : index
    %51 = vector.load %arg6[%c0_13, %c0_14] : memref<8x1xf32, #tpu.memory_space<vmem>>, vector<8x1xf32>
    %52 = vector.broadcast %51 : vector<8x1xf32> to vector<8x384xf32>
    %53 = arith.addf %50, %52 : vector<8x384xf32>
    %cst_15 = arith.constant 0.000000e+00 : f32
    %54 = vector.broadcast %cst_15 : f32 to vector<8x384xf32>
    %55 = arith.maximumf %53, %54 : vector<8x384xf32>
    %56 = vector.broadcast %2 : vector<1x384xf32> to vector<8x384xf32>
    %57 = arith.mulf %55, %56 : vector<8x384xf32>
    %c18_i32_16 = arith.constant 18 : i32
    %58 = tpu.dynamic_rotate %57 by %c18_i32_16 dim 1 : vector<8x384xf32>, i32 -> vector<8x384xf32>
    %c366_i32_17 = arith.constant 366 : i32
    %59 = tpu.dynamic_rotate %57 by %c366_i32_17 dim 1 : vector<8x384xf32>, i32 -> vector<8x384xf32>
    %60 = vector.extract_strided_slice %4 {offsets = [0, 0], sizes = [8, 1], strides = [1, 1]} : vector<8x9xf32> to vector<8x1xf32>
    %61 = vector.broadcast %60 : vector<8x1xf32> to vector<8x384xf32>
    %62 = arith.mulf %58, %61 : vector<8x384xf32>
    %63 = vector.extract_strided_slice %4 {offsets = [0, 3], sizes = [8, 1], strides = [1, 1]} : vector<8x9xf32> to vector<8x1xf32>
    %64 = vector.broadcast %63 : vector<8x1xf32> to vector<8x384xf32>
    %65 = arith.mulf %57, %64 : vector<8x384xf32>
    %66 = arith.addf %62, %65 : vector<8x384xf32>
    %67 = vector.extract_strided_slice %4 {offsets = [0, 6], sizes = [8, 1], strides = [1, 1]} : vector<8x9xf32> to vector<8x1xf32>
    %68 = vector.broadcast %67 : vector<8x1xf32> to vector<8x384xf32>
    %69 = arith.mulf %59, %68 : vector<8x384xf32>
    %70 = arith.addf %66, %69 : vector<8x384xf32>
    %71 = vector.extract_strided_slice %4 {offsets = [0, 1], sizes = [8, 1], strides = [1, 1]} : vector<8x9xf32> to vector<8x1xf32>
    %72 = vector.broadcast %71 : vector<8x1xf32> to vector<8x384xf32>
    %73 = arith.mulf %58, %72 : vector<8x384xf32>
    %74 = vector.extract_strided_slice %4 {offsets = [0, 4], sizes = [8, 1], strides = [1, 1]} : vector<8x9xf32> to vector<8x1xf32>
    %75 = vector.broadcast %74 : vector<8x1xf32> to vector<8x384xf32>
    %76 = arith.mulf %57, %75 : vector<8x384xf32>
    %77 = arith.addf %73, %76 : vector<8x384xf32>
    %78 = vector.extract_strided_slice %4 {offsets = [0, 7], sizes = [8, 1], strides = [1, 1]} : vector<8x9xf32> to vector<8x1xf32>
    %79 = vector.broadcast %78 : vector<8x1xf32> to vector<8x384xf32>
    %80 = arith.mulf %59, %79 : vector<8x384xf32>
    %81 = arith.addf %77, %80 : vector<8x384xf32>
    %82 = vector.extract_strided_slice %4 {offsets = [0, 2], sizes = [8, 1], strides = [1, 1]} : vector<8x9xf32> to vector<8x1xf32>
    %83 = vector.broadcast %82 : vector<8x1xf32> to vector<8x384xf32>
    %84 = arith.mulf %58, %83 : vector<8x384xf32>
    %85 = vector.extract_strided_slice %4 {offsets = [0, 5], sizes = [8, 1], strides = [1, 1]} : vector<8x9xf32> to vector<8x1xf32>
    %86 = vector.broadcast %85 : vector<8x1xf32> to vector<8x384xf32>
    %87 = arith.mulf %57, %86 : vector<8x384xf32>
    %88 = arith.addf %84, %87 : vector<8x384xf32>
    %89 = vector.extract_strided_slice %4 {offsets = [0, 8], sizes = [8, 1], strides = [1, 1]} : vector<8x9xf32> to vector<8x1xf32>
    %90 = vector.broadcast %89 : vector<8x1xf32> to vector<8x384xf32>
    %91 = arith.mulf %59, %90 : vector<8x384xf32>
    %92 = arith.addf %88, %91 : vector<8x384xf32>
    %c1_i32_18 = arith.constant 1 : i32
    %93 = tpu.dynamic_rotate %70 by %c1_i32_18 dim 1 : vector<8x384xf32>, i32 -> vector<8x384xf32>
    %94 = arith.addf %93, %81 : vector<8x384xf32>
    %c383_i32_19 = arith.constant 383 : i32
    %95 = tpu.dynamic_rotate %92 by %c383_i32_19 dim 1 : vector<8x384xf32>, i32 -> vector<8x384xf32>
    %96 = arith.addf %94, %95 : vector<8x384xf32>
    %c0_20 = arith.constant 0 : index
    %c0_21 = arith.constant 0 : index
    %97 = vector.load %arg8[%c0_20, %c0_21] : memref<8x1xf32, #tpu.memory_space<vmem>>, vector<8x1xf32>
    %98 = vector.broadcast %97 : vector<8x1xf32> to vector<8x384xf32>
    %99 = arith.addf %96, %98 : vector<8x384xf32>
    %cst_22 = arith.constant 0.000000e+00 : f32
    %100 = vector.broadcast %cst_22 : f32 to vector<8x384xf32>
    %101 = arith.maximumf %99, %100 : vector<8x384xf32>
    %c0_23 = arith.constant 0 : index
    %c0_24 = arith.constant 0 : index
    %102 = vector.load %arg9[%c0_23, %c0_24] : memref<8x8xf32, #tpu.memory_space<vmem>>, vector<8x8xf32>
    %cst_25 = arith.constant dense<0.000000e+00> : vector<8x384xf32>
    %103 = tpu.matmul %102, %101, %cst_25 {dimension_numbers = #tpu.dot_dimension_numbers<[1], [0], [0], [1], [0, 0, 1, 1], [], []>} : vector<8x8xf32>, vector<8x384xf32>, vector<8x384xf32> -> vector<8x384xf32>
    %c0_26 = arith.constant 0 : index
    %c0_27 = arith.constant 0 : index
    %104 = vector.load %arg10[%c0_26, %c0_27] : memref<8x1xf32, #tpu.memory_space<vmem>>, vector<8x1xf32>
    %105 = vector.broadcast %104 : vector<8x1xf32> to vector<8x384xf32>
    %106 = arith.addf %103, %105 : vector<8x384xf32>
    %cst_28 = arith.constant 0.000000e+00 : f32
    %107 = vector.broadcast %cst_28 : f32 to vector<8x384xf32>
    %108 = arith.maximumf %106, %107 : vector<8x384xf32>
    %c0_29 = arith.constant 0 : index
    %c0_30 = arith.constant 0 : index
    %109 = vector.load %arg11[%c0_29, %c0_30] : memref<8x8xf32, #tpu.memory_space<vmem>>, vector<8x8xf32>
    %cst_31 = arith.constant dense<0.000000e+00> : vector<8x384xf32>
    %110 = tpu.matmul %109, %108, %cst_31 {dimension_numbers = #tpu.dot_dimension_numbers<[1], [0], [0], [1], [0, 0, 1, 1], [], []>} : vector<8x8xf32>, vector<8x384xf32>, vector<8x384xf32> -> vector<8x384xf32>
    %c0_32 = arith.constant 0 : index
    %c0_33 = arith.constant 0 : index
    %111 = vector.load %arg12[%c0_32, %c0_33] : memref<8x1xf32, #tpu.memory_space<vmem>>, vector<8x1xf32>
    %112 = vector.broadcast %111 : vector<8x1xf32> to vector<8x384xf32>
    %113 = arith.addf %110, %112 : vector<8x384xf32>
    %c0_34 = arith.constant 0 : index
    %c0_35 = arith.constant 0 : index
    %c0_36 = arith.constant 0 : index
    %114 = vector.load %arg13[%c0_34, %c0_35, %c0_36] : memref<1x8x384xf32, #tpu.memory_space<vmem>>, vector<1x8x384xf32>
    %115 = vector.shape_cast %114 : vector<1x8x384xf32> to vector<8x384xf32>
    %116 = vector.shape_cast %113 : vector<8x384xf32> to vector<1x8x384xf32>
    tpu.vector_store %arg13[%c0_34, %c0_35, %c0_36], %116 {strides = array<i32>} : memref<1x8x384xf32, #tpu.memory_space<vmem>>, vector<1x8x384xf32>,
    return
  }
  func.func @transform_0(%arg0: i32) -> (i32, i32, i32) {
    %c0_i32 = arith.constant 0 : i32
    %c0_i32_0 = arith.constant 0 : i32
    %c0_i32_1 = arith.constant 0 : i32
    return %arg0, %c0_i32, %c0_i32_0 : i32, i32, i32
  }
  func.func @transform_1(%arg0: i32) -> (i32, i32) {
    %c0_i32 = arith.constant 0 : i32
    %c0_i32_0 = arith.constant 0 : i32
    %c0_i32_1 = arith.constant 0 : i32
    return %c0_i32, %c0_i32_0 : i32, i32
  }
  func.func @transform_2(%arg0: i32) -> (i32, i32) {
    %c0_i32 = arith.constant 0 : i32
    %c0_i32_0 = arith.constant 0 : i32
    %c0_i32_1 = arith.constant 0 : i32
    return %c0_i32, %c0_i32_0 : i32, i32
  }
  func.func @transform_3(%arg0: i32) -> (i32, i32) {
    %c0_i32 = arith.constant 0 : i32
    %c0_i32_0 = arith.constant 0 : i32
    %c0_i32_1 = arith.constant 0 : i32
    return %c0_i32, %c0_i32_0 : i32, i32
  }
  func.func @transform_4(%arg0: i32) -> (i32, i32) {
    %c0_i32 = arith.constant 0 : i32
    %c0_i32_0 = arith.constant 0 : i32
    %c0_i32_1 = arith.constant 0 : i32
    return %c0_i32, %c0_i32_0 : i32, i32
  }
  func.func @transform_5(%arg0: i32) -> (i32, i32) {
    %c0_i32 = arith.constant 0 : i32
    %c0_i32_0 = arith.constant 0 : i32
    %c0_i32_1 = arith.constant 0 : i32
    return %c0_i32, %c0_i32_0 : i32, i32
  }
  func.func @transform_6(%arg0: i32) -> (i32, i32) {
    %c0_i32 = arith.constant 0 : i32
    %c0_i32_0 = arith.constant 0 : i32
    %c0_i32_1 = arith.constant 0 : i32
    return %c0_i32, %c0_i32_0 : i32, i32
  }
  func.func @transform_7(%arg0: i32) -> (i32, i32) {
    %c0_i32 = arith.constant 0 : i32
    %c0_i32_0 = arith.constant 0 : i32
    %c0_i32_1 = arith.constant 0 : i32
    return %c0_i32, %c0_i32_0 : i32, i32
  }
  func.func @transform_8(%arg0: i32) -> (i32, i32) {
    %c0_i32 = arith.constant 0 : i32
    %c0_i32_0 = arith.constant 0 : i32
    %c0_i32_1 = arith.constant 0 : i32
    return %c0_i32, %c0_i32_0 : i32, i32
  }
  func.func @transform_9(%arg0: i32) -> (i32, i32) {
    %c0_i32 = arith.constant 0 : i32
    %c0_i32_0 = arith.constant 0 : i32
    %c0_i32_1 = arith.constant 0 : i32
    return %c0_i32, %c0_i32_0 : i32, i32
  }
  func.func @transform_10(%arg0: i32) -> (i32, i32) {
    %c0_i32 = arith.constant 0 : i32
    %c0_i32_0 = arith.constant 0 : i32
    %c0_i32_1 = arith.constant 0 : i32
    return %c0_i32, %c0_i32_0 : i32, i32
  }
  func.func @transform_11(%arg0: i32) -> (i32, i32) {
    %c0_i32 = arith.constant 0 : i32
    %c0_i32_0 = arith.constant 0 : i32
    %c0_i32_1 = arith.constant 0 : i32
    return %c0_i32, %c0_i32_0 : i32, i32
  }
  func.func @transform_12(%arg0: i32) -> (i32, i32, i32) {
    %c0_i32 = arith.constant 0 : i32
    %c0_i32_0 = arith.constant 0 : i32
    %c0_i32_1 = arith.constant 0 : i32
    return %arg0, %c0_i32, %c0_i32_0 : i32, i32, i32
  }
}

</mosaic_0001>

<llo_original>
// kernel: tpu_custom_call.1
$region0: #{tpu_custom_call.1}
  #allocation0 [shape = 'u32[]', space=smem, size = 0x4, offset = 0x4, fixed_abs, tag = 'smem constant byte address 0x4 - core index']
  #allocation1 [shape = 'u32[72,128]{1,0:T(1,128)}', space=vmem, size = 0x9000, scoped, tag = 'internal scratch']
  %s0 = inlined_call_operand.hbm [shape: f32[2,8,384], index: 0, kind: input, shape index: {}]
  %s1 = inlined_call_operand.hbm [shape: f32[1,384], index: 1, kind: input, shape index: {}]
  %s2 = inlined_call_operand.vmem [shape: f32[8,9], index: 2, kind: input, shape index: {}]
  %s3 = inlined_call_operand.vmem [shape: f32[8,1], index: 3, kind: input, shape index: {}]
  %s4 = inlined_call_operand.vmem [shape: f32[8,8], index: 4, kind: input, shape index: {}]
  %s5 = inlined_call_operand.vmem [shape: f32[8,1], index: 5, kind: input, shape index: {}]
  %s6 = inlined_call_operand.vmem [shape: f32[8,9], index: 6, kind: input, shape index: {}]
  %s7 = inlined_call_operand.vmem [shape: f32[8,1], index: 7, kind: input, shape index: {}]
  %s8 = inlined_call_operand.vmem [shape: f32[8,8], index: 8, kind: input, shape index: {}]
  %s9 = inlined_call_operand.vmem [shape: f32[8,1], index: 9, kind: input, shape index: {}]
  %s10 = inlined_call_operand.vmem [shape: f32[8,8], index: 10, kind: input, shape index: {}]
  %s11 = inlined_call_operand.vmem [shape: f32[8,1], index: 11, kind: input, shape index: {}]
  %s12 = inlined_call_operand.hbm [shape: f32[2,8,384], index: 12, kind: output, shape index: {}]
  %s13 = sld [smem:[#allocation0]]
  $region89: #{tpu_custom_call.1} parent=0
    _
  %s15 = ssub.s32 1, %s13
  %s16 = scalar_select 0, %s15, %s13
  $region1: #{tpu_custom_call.1} parent=0
    #allocation2 [shape = 'u8[24576]{0}', space=vmem, size = 0x6000, scoped, tag = 'input window, operand 0']
    #allocation3 [shape = 's32[2]{0}', space=sflag, size = 0x8, scoped, tag = 'scoped memory for tpu_custom_call.1']
    #allocation4 [shape = 's32[2]{0}', space=sflag, size = 0x8, scoped, tag = 'scoped memory for tpu_custom_call.1']
    #allocation5 [shape = 'u8[1536]{0}', space=vmem, size = 0x800, scoped, tag = 'input window, operand 1, single buffered']
    #allocation6 [shape = 's32[1]{0}', space=sflag, size = 0x4, scoped, tag = 'scoped memory for tpu_custom_call.1']
    #allocation7 [shape = 'u8[24576]{0}', space=vmem, size = 0x6000, scoped, tag = 'output window, operand 0']
    %17 = vsyncpa [#allocation3], 0
    %s18 = scalar_lea.sflag [#allocation3], 1
    %19 = vsyncpa %s18, 0
    %20 = vsyncpa [#allocation6], 0
    %21 = vsyncpa [#allocation4], 0
    %s22 = scalar_lea.sflag [#allocation4], 1
    %23 = vsyncpa %s22, 0
    loop: start=0, step=1, limit=4
    $region2: #{tpu_custom_call.1} parent=1 // loop_pre_header
      _
    $region3: #{tpu_custom_call.1} parent=1 // loop_header
      %s25 = sphi 0, %s29
      %p26 = scmp.ge.s32.totalorder %s25, 4
      %s35 = sphi 0, %s37
      %s38 = sphi 0, %s35
      %s39 = sphi 0, %s38
      %s55 = sphi 0, %s39
      %s59 = sphi 0, %s59
      %s61 = sphi 0, %s59
      %s62 = sphi 0, %s61
      %s76 = sphi 0, %s62
      %s80 = sphi 0, %s80
      %s82 = sphi 0, %s80
      %s83 = sphi 0, %s82
      %s97 = sphi 0, %s83
      %s101 = sphi 0, %s101
      %s103 = sphi 0, %s101
      %s104 = sphi 0, %s103
      %s118 = sphi 0, %s104
      %s122 = sphi 0, %s122
      %s124 = sphi 0, %s122
      %s125 = sphi 0, %s124
      %s139 = sphi 0, %s125
      %s143 = sphi 0, %s143
      %s145 = sphi 0, %s143
      %s146 = sphi 0, %s145
      %s160 = sphi 0, %s146
      %s164 = sphi 0, %s164
      %s166 = sphi 0, %s164
      %s167 = sphi 0, %s166
      %s181 = sphi 0, %s167
      %s185 = sphi 0, %s185
      %s187 = sphi 0, %s185
      %s188 = sphi 0, %s187
      %s202 = sphi 0, %s188
      %s206 = sphi 0, %s206
      %s208 = sphi 0, %s206
      %s209 = sphi 0, %s208
      %s223 = sphi 0, %s209
      %s227 = sphi 0, %s227
      %s229 = sphi 0, %s227
      %s230 = sphi 0, %s229
      %s244 = sphi 0, %s230
      %s248 = sphi 0, %s248
      %s250 = sphi 0, %s248
      %s251 = sphi 0, %s250
      %s265 = sphi 0, %s251
      %s269 = sphi 0, %s269
      %s271 = sphi 0, %s269
      %s272 = sphi 0, %s271
      %s286 = sphi 0, %s272
      %s292 = sphi 0, %s294
      %s295 = sphi 0, %s292
      %s296 = sphi 0, %s295
      %s312 = sphi 0, %s296
    $region4: #{tpu_custom_call.1} parent=1 // loop_header_branch
      %28 = sbr.rel (%p26) target = $region8
    $region5: #{tpu_custom_call.1} parent=1 // loop_body
      %s30 = ssub.s32 %s25, 1
      %s31 = ssub.s32 %s25, 2
      %s32 = sadd.s32 %s25, 1
      %s33 = ssub.s32 %s25, %s32
      %p34 = scmp.eq.s32.totalorder %s33, 0
      %s36 = sadd.s32 %s35, 1
      %s37 = scalar_select %p34, %s35, %s36
      %p40 = pneg %p34
      %p41 = scmp.eq.s32.totalorder %s25, 1
      %p42 = por %p40, %p41
      %p43 = scmp.ne.s32.totalorder %s35, %s38
      %p44 = scmp.eq.s32.totalorder %s25, 0
      %p45 = por %p43, %p44
      %p46 = scmp.ne.s32.totalorder %s35, %s38
      %p47 = scmp.eq.s32.totalorder %s30, 1
      %p48 = por %p46, %p47
      %p49 = scmp.ne.s32.totalorder %s38, %s39
      %p50 = scmp.eq.s32.totalorder %s30, 0
      %p51 = por %p49, %p50
      %p52 = scmp.ne.s32.totalorder %s38, %s39
      %p53 = scmp.eq.s32.totalorder %s31, 1
      %p54 = por %p52, %p53
      %p56 = scmp.ne.s32.totalorder %s39, %s55
      %p57 = scmp.eq.s32.totalorder %s31, 0
      %p58 = por %p56, %p57
      %s60 = sadd.s32 %s59, 1
      %p63 = scmp.eq.s32.totalorder %s25, 1
      %p64 = scmp.ne.s32.totalorder %s59, %s61
      %p65 = scmp.eq.s32.totalorder %s25, 0
      %p66 = por %p64, %p65
      %p67 = scmp.ne.s32.totalorder %s59, %s61
      %p68 = scmp.eq.s32.totalorder %s30, 1
      %p69 = por %p67, %p68
      %p70 = scmp.ne.s32.totalorder %s61, %s62
      %p71 = scmp.eq.s32.totalorder %s30, 0
      %p72 = por %p70, %p71
      %p73 = scmp.ne.s32.totalorder %s61, %s62
      %p74 = scmp.eq.s32.totalorder %s31, 1
      %p75 = por %p73, %p74
      %p77 = scmp.ne.s32.totalorder %s62, %s76
      %p78 = scmp.eq.s32.totalorder %s31, 0
      %p79 = por %p77, %p78
      %s81 = sadd.s32 %s80, 1
      %p84 = scmp.eq.s32.totalorder %s25, 1
      %p85 = scmp.ne.s32.totalorder %s80, %s82
      %p86 = scmp.eq.s32.totalorder %s25, 0
      %p87 = por %p85, %p86
      %p88 = scmp.ne.s32.totalorder %s80, %s82
      %p89 = scmp.eq.s32.totalorder %s30, 1
      %p90 = por %p88, %p89
      %p91 = scmp.ne.s32.totalorder %s82, %s83
      %p92 = scmp.eq.s32.totalorder %s30, 0
      %p93 = por %p91, %p92
      %p94 = scmp.ne.s32.totalorder %s82, %s83
      %p95 = scmp.eq.s32.totalorder %s31, 1
      %p96 = por %p94, %p95
      %p98 = scmp.ne.s32.totalorder %s83, %s97
      %p99 = scmp.eq.s32.totalorder %s31, 0
      %p100 = por %p98, %p99
      %s102 = sadd.s32 %s101, 1
      %p105 = scmp.eq.s32.totalorder %s25, 1
      %p106 = scmp.ne.s32.totalorder %s101, %s103
      %p107 = scmp.eq.s32.totalorder %s25, 0
      %p108 = por %p106, %p107
      %p109 = scmp.ne.s32.totalorder %s101, %s103
      %p110 = scmp.eq.s32.totalorder %s30, 1
      %p111 = por %p109, %p110
      %p112 = scmp.ne.s32.totalorder %s103, %s104
      %p113 = scmp.eq.s32.totalorder %s30, 0
      %p114 = por %p112, %p113
      %p115 = scmp.ne.s32.totalorder %s103, %s104
      %p116 = scmp.eq.s32.totalorder %s31, 1
      %p117 = por %p115, %p116
      %p119 = scmp.ne.s32.totalorder %s104, %s118
      %p120 = scmp.eq.s32.totalorder %s31, 0
      %p121 = por %p119, %p120
      %s123 = sadd.s32 %s122, 1
      %p126 = scmp.eq.s32.totalorder %s25, 1
      %p127 = scmp.ne.s32.totalorder %s122, %s124
      %p128 = scmp.eq.s32.totalorder %s25, 0
      %p129 = por %p127, %p128
      %p130 = scmp.ne.s32.totalorder %s122, %s124
      %p131 = scmp.eq.s32.totalorder %s30, 1
      %p132 = por %p130, %p131
      %p133 = scmp.ne.s32.totalorder %s124, %s125
      %p134 = scmp.eq.s32.totalorder %s30, 0
      %p135 = por %p133, %p134
      %p136 = scmp.ne.s32.totalorder %s124, %s125
      %p137 = scmp.eq.s32.totalorder %s31, 1
      %p138 = por %p136, %p137
      %p140 = scmp.ne.s32.totalorder %s125, %s139
      %p141 = scmp.eq.s32.totalorder %s31, 0
      %p142 = por %p140, %p141
      %s144 = sadd.s32 %s143, 1
      %p147 = scmp.eq.s32.totalorder %s25, 1
      %p148 = scmp.ne.s32.totalorder %s143, %s145
      %p149 = scmp.eq.s32.totalorder %s25, 0
      %p150 = por %p148, %p149
      %p151 = scmp.ne.s32.totalorder %s143, %s145
      %p152 = scmp.eq.s32.totalorder %s30, 1
      %p153 = por %p151, %p152
      %p154 = scmp.ne.s32.totalorder %s145, %s146
      %p155 = scmp.eq.s32.totalorder %s30, 0
      %p156 = por %p154, %p155
      %p157 = scmp.ne.s32.totalorder %s145, %s146
      %p158 = scmp.eq.s32.totalorder %s31, 1
      %p159 = por %p157, %p158
      %p161 = scmp.ne.s32.totalorder %s146, %s160
      %p162 = scmp.eq.s32.totalorder %s31, 0
      %p163 = por %p161, %p162
      %s165 = sadd.s32 %s164, 1
      %p168 = scmp.eq.s32.totalorder %s25, 1
      %p169 = scmp.ne.s32.totalorder %s164, %s166
      %p170 = scmp.eq.s32.totalorder %s25, 0
      %p171 = por %p169, %p170
      %p172 = scmp.ne.s32.totalorder %s164, %s166
      %p173 = scmp.eq.s32.totalorder %s30, 1
      %p174 = por %p172, %p173
      %p175 = scmp.ne.s32.totalorder %s166, %s167
      %p176 = scmp.eq.s32.totalorder %s30, 0
      %p177 = por %p175, %p176
      %p178 = scmp.ne.s32.totalorder %s166, %s167
      %p179 = scmp.eq.s32.totalorder %s31, 1
      %p180 = por %p178, %p179
      %p182 = scmp.ne.s32.totalorder %s167, %s181
      %p183 = scmp.eq.s32.totalorder %s31, 0
      %p184 = por %p182, %p183
      %s186 = sadd.s32 %s185, 1
      %p189 = scmp.eq.s32.totalorder %s25, 1
      %p190 = scmp.ne.s32.totalorder %s185, %s187
      %p191 = scmp.eq.s32.totalorder %s25, 0
      %p192 = por %p190, %p191
      %p193 = scmp.ne.s32.totalorder %s185, %s187
      %p194 = scmp.eq.s32.totalorder %s30, 1
      %p195 = por %p193, %p194
      %p196 = scmp.ne.s32.totalorder %s187, %s188
      %p197 = scmp.eq.s32.totalorder %s30, 0
      %p198 = por %p196, %p197
      %p199 = scmp.ne.s32.totalorder %s187, %s188
      %p200 = scmp.eq.s32.totalorder %s31, 1
      %p201 = por %p199, %p200
      %p203 = scmp.ne.s32.totalorder %s188, %s202
      %p204 = scmp.eq.s32.totalorder %s31, 0
      %p205 = por %p203, %p204
      %s207 = sadd.s32 %s206, 1
      %p210 = scmp.eq.s32.totalorder %s25, 1
      %p211 = scmp.ne.s32.totalorder %s206, %s208
      %p212 = scmp.eq.s32.totalorder %s25, 0
      %p213 = por %p211, %p212
      %p214 = scmp.ne.s32.totalorder %s206, %s208
      %p215 = scmp.eq.s32.totalorder %s30, 1
      %p216 = por %p214, %p215
      %p217 = scmp.ne.s32.totalorder %s208, %s209
      %p218 = scmp.eq.s32.totalorder %s30, 0
      %p219 = por %p217, %p218
      %p220 = scmp.ne.s32.totalorder %s208, %s209
      %p221 = scmp.eq.s32.totalorder %s31, 1
      %p222 = por %p220, %p221
      %p224 = scmp.ne.s32.totalorder %s209, %s223
      %p225 = scmp.eq.s32.totalorder %s31, 0
      %p226 = por %p224, %p225
      %s228 = sadd.s32 %s227, 1
      %p231 = scmp.eq.s32.totalorder %s25, 1
      %p232 = scmp.ne.s32.totalorder %s227, %s229
      %p233 = scmp.eq.s32.totalorder %s25, 0
      %p234 = por %p232, %p233
      %p235 = scmp.ne.s32.totalorder %s227, %s229
      %p236 = scmp.eq.s32.totalorder %s30, 1
      %p237 = por %p235, %p236
      %p238 = scmp.ne.s32.totalorder %s229, %s230
      %p239 = scmp.eq.s32.totalorder %s30, 0
      %p240 = por %p238, %p239
      %p241 = scmp.ne.s32.totalorder %s229, %s230
      %p242 = scmp.eq.s32.totalorder %s31, 1
      %p243 = por %p241, %p242
      %p245 = scmp.ne.s32.totalorder %s230, %s244
      %p246 = scmp.eq.s32.totalorder %s31, 0
      %p247 = por %p245, %p246
      %s249 = sadd.s32 %s248, 1
      %p252 = scmp.eq.s32.totalorder %s25, 1
      %p253 = scmp.ne.s32.totalorder %s248, %s250
      %p254 = scmp.eq.s32.totalorder %s25, 0
      %p255 = por %p253, %p254
      %p256 = scmp.ne.s32.totalorder %s248, %s250
      %p257 = scmp.eq.s32.totalorder %s30, 1
      %p258 = por %p256, %p257
      %p259 = scmp.ne.s32.totalorder %s250, %s251
      %p260 = scmp.eq.s32.totalorder %s30, 0
      %p261 = por %p259, %p260
      %p262 = scmp.ne.s32.totalorder %s250, %s251
      %p263 = scmp.eq.s32.totalorder %s31, 1
      %p264 = por %p262, %p263
      %p266 = scmp.ne.s32.totalorder %s251, %s265
      %p267 = scmp.eq.s32.totalorder %s31, 0
      %p268 = por %p266, %p267
      %s270 = sadd.s32 %s269, 1
      %p273 = scmp.eq.s32.totalorder %s25, 1
      %p274 = scmp.ne.s32.totalorder %s269, %s271
      %p275 = scmp.eq.s32.totalorder %s25, 0
      %p276 = por %p274, %p275
      %p277 = scmp.ne.s32.totalorder %s269, %s271
      %p278 = scmp.eq.s32.totalorder %s30, 1
      %p279 = por %p277, %p278
      %p280 = scmp.ne.s32.totalorder %s271, %s272
      %p281 = scmp.eq.s32.totalorder %s30, 0
      %p282 = por %p280, %p281
      %p283 = scmp.ne.s32.totalorder %s271, %s272
      %p284 = scmp.eq.s32.totalorder %s31, 1
      %p285 = por %p283, %p284
      %p287 = scmp.ne.s32.totalorder %s272, %s286
      %p288 = scmp.eq.s32.totalorder %s31, 0
      %p289 = por %p287, %p288
      %s290 = ssub.s32 %s25, %s32
      %p291 = scmp.eq.s32.totalorder %s290, 0
      %s293 = sadd.s32 %s292, 1
      %s294 = scalar_select %p291, %s292, %s293
      %p297 = pneg %p291
      %p298 = scmp.eq.s32.totalorder %s25, 1
      %p299 = por %p297, %p298
      %p300 = scmp.ne.s32.totalorder %s292, %s295
      %p301 = scmp.eq.s32.totalorder %s25, 0
      %p302 = por %p300, %p301
      %p303 = scmp.ne.s32.totalorder %s292, %s295
      %p304 = scmp.eq.s32.totalorder %s30, 1
      %p305 = por %p303, %p304
      %p306 = scmp.ne.s32.totalorder %s295, %s296
      %p307 = scmp.eq.s32.totalorder %s30, 0
      %p308 = por %p306, %p307
      %p309 = scmp.ne.s32.totalorder %s295, %s296
      %p310 = scmp.eq.s32.totalorder %s31, 1
      %p311 = por %p309, %p310
      %p313 = scmp.ne.s32.totalorder %s296, %s312
      %p314 = scmp.eq.s32.totalorder %s31, 0
      %p315 = por %p313, %p314
      %p316 = scmp.le.s32.totalorder 1, %s25
      %p317 = scmp.lt.s32.totalorder %s25, 3
      %p318 = pnand %p316, %p317
      %p319 = pneg %p318
      // Predicated region
      $region9: #{tpu_custom_call.1} parent=5 // pred_check
        _
      $region10: #{tpu_custom_call.1} parent=5 // pred_check_branch
        %321 = sbr.rel (%p318) target = $region12
      $region11: #{tpu_custom_call.1} parent=5 // pred_region
        %s322 = ssub.s32 %s25, 1
        // Predicated region
        $region13: #{tpu_custom_call.1} parent=11 // pred_check
          %p323 = pneg %p72
        $region14: #{tpu_custom_call.1} parent=11 // pred_check_branch
          %325 = sbr.rel (%p323) target = $region16
        $region15: #{tpu_custom_call.1} parent=11 // pred_region
          %327 = vsyncadd [#allocation6], 0
          %s329 = sshll.u32 %s1, 4
          %s330 = int_to_ptr.hbm [resolvable:$true] %s329
          %s331 = sshll.u32 [#allocation5], 4
          %s332 = int_to_ptr.vmem [resolvable:$true] %s331
          %334 = dma.hbm_to_vmem [thread:$0]  %s330, 48, %s332, [#allocation6]
        $region16: #{tpu_custom_call.1} parent=11 // pred_fallthru
          _
        // Predicated region
        $region17: #{tpu_custom_call.1} parent=11 // pred_check
          %p335 = pneg %p93
        $region18: #{tpu_custom_call.1} parent=11 // pred_check_branch
          %337 = sbr.rel (%p335) target = $region20
        $region19: #{tpu_custom_call.1} parent=11 // pred_region
          _
        $region20: #{tpu_custom_call.1} parent=11 // pred_fallthru
          _
        // Predicated region
        $region21: #{tpu_custom_call.1} parent=11 // pred_check
          %p338 = pneg %p114
        $region22: #{tpu_custom_call.1} parent=11 // pred_check_branch
          %340 = sbr.rel (%p338) target = $region24
        $region23: #{tpu_custom_call.1} parent=11 // pred_region
          _
        $region24: #{tpu_custom_call.1} parent=11 // pred_fallthru
          _
        // Predicated region
        $region25: #{tpu_custom_call.1} parent=11 // pred_check
          %p341 = pneg %p135
        $region26: #{tpu_custom_call.1} parent=11 // pred_check_branch
          %343 = sbr.rel (%p341) target = $region28
        $region27: #{tpu_custom_call.1} parent=11 // pred_region
          _
        $region28: #{tpu_custom_call.1} parent=11 // pred_fallthru
          _
        // Predicated region
        $region29: #{tpu_custom_call.1} parent=11 // pred_check
          %p344 = pneg %p156
        $region30: #{tpu_custom_call.1} parent=11 // pred_check_branch
          %346 = sbr.rel (%p344) target = $region32
        $region31: #{tpu_custom_call.1} parent=11 // pred_region
          _
        $region32: #{tpu_custom_call.1} parent=11 // pred_fallthru
          _
        // Predicated region
        $region33: #{tpu_custom_call.1} parent=11 // pred_check
          %p347 = pneg %p177
        $region34: #{tpu_custom_call.1} parent=11 // pred_check_branch
          %349 = sbr.rel (%p347) target = $region36
        $region35: #{tpu_custom_call.1} parent=11 // pred_region
          _
        $region36: #{tpu_custom_call.1} parent=11 // pred_fallthru
          _
        // Predicated region
        $region37: #{tpu_custom_call.1} parent=11 // pred_check
          %p350 = pneg %p198
        $region38: #{tpu_custom_call.1} parent=11 // pred_check_branch
          %352 = sbr.rel (%p350) target = $region40
        $region39: #{tpu_custom_call.1} parent=11 // pred_region
          _
        $region40: #{tpu_custom_call.1} parent=11 // pred_fallthru
          _
        // Predicated region
        $region41: #{tpu_custom_call.1} parent=11 // pred_check
          %p353 = pneg %p219
        $region42: #{tpu_custom_call.1} parent=11 // pred_check_branch
          %355 = sbr.rel (%p353) target = $region44
        $region43: #{tpu_custom_call.1} parent=11 // pred_region
          _
        $region44: #{tpu_custom_call.1} parent=11 // pred_fallthru
          _
        // Predicated region
        $region45: #{tpu_custom_call.1} parent=11 // pred_check
          %p356 = pneg %p240
        $region46: #{tpu_custom_call.1} parent=11 // pred_check_branch
          %358 = sbr.rel (%p356) target = $region48
        $region47: #{tpu_custom_call.1} parent=11 // pred_region
          _
        $region48: #{tpu_custom_call.1} parent=11 // pred_fallthru
          _
        // Predicated region
        $region49: #{tpu_custom_call.1} parent=11 // pred_check
          %p359 = pneg %p261
        $region50: #{tpu_custom_call.1} parent=11 // pred_check_branch
          %361 = sbr.rel (%p359) target = $region52
        $region51: #{tpu_custom_call.1} parent=11 // pred_region
          _
        $region52: #{tpu_custom_call.1} parent=11 // pred_fallthru
          _
        // Predicated region
        $region53: #{tpu_custom_call.1} parent=11 // pred_check
          %p362 = pneg %p282
        $region54: #{tpu_custom_call.1} parent=11 // pred_check_branch
          %364 = sbr.rel (%p362) target = $region56
        $region55: #{tpu_custom_call.1} parent=11 // pred_region
          _
        $region56: #{tpu_custom_call.1} parent=11 // pred_fallthru
          _
      $region12: #{tpu_custom_call.1} parent=5 // pred_fallthru
        _
      %p365 = scmp.lt.s32.totalorder %s25, 2
      // Predicated region
      $region57: #{tpu_custom_call.1} parent=5 // pred_check
        %p366 = pneg %p365
      $region58: #{tpu_custom_call.1} parent=5 // pred_check_branch
        %368 = sbr.rel (%p366) target = $region60
      $region59: #{tpu_custom_call.1} parent=5 // pred_region
        // Predicated region
        $region61: #{tpu_custom_call.1} parent=59 // pred_check
          %p369 = pneg %p45
        $region62: #{tpu_custom_call.1} parent=59 // pred_check_branch
          %371 = sbr.rel (%p369) target = $region64
        $region63: #{tpu_custom_call.1} parent=59 // pred_region
          %s372 = sand.u32 %s35, 1
          %s373 = scalar_lea.sflag [#allocation3], %s372
          %s374 = sand.u32 %s35, 1
          %s375 = smul.addr %s374, 24
          %s376 = scalar_lea.vmem [#allocation2], %s375
          %378 = vsyncadd %s373, 0
          %s379 = smul.addr %s25, 3
          %s380 = smul.addr %s379, 8
          %s381 = scalar_lea.hbm %s0, %s380
          %s383 = sshll.u32 %s381, 4
          %s384 = int_to_ptr.hbm [resolvable:$true] %s383
          %s385 = sshll.u32 %s376, 4
          %s386 = int_to_ptr.vmem [resolvable:$true] %s385
          %388 = dma.hbm_to_vmem [thread:$0]  %s384, 384, %s386, %s373
        $region64: #{tpu_custom_call.1} parent=59 // pred_fallthru
          _
      $region60: #{tpu_custom_call.1} parent=5 // pred_fallthru
        _
      %p389 = scmp.le.s32.totalorder 1, %s25
      %p390 = scmp.lt.s32.totalorder %s25, 3
      %p391 = pnand %p389, %p390
      %p392 = pneg %p391
      // Predicated region
      $region65: #{tpu_custom_call.1} parent=5 // pred_check
        _
      $region66: #{tpu_custom_call.1} parent=5 // pred_check_branch
        %394 = sbr.rel (%p391) target = $region68
      $region67: #{tpu_custom_call.1} parent=5 // pred_region
        %s395 = ssub.s32 %s25, 1
        %s396 = sand.u32 %s38, 1
        %s397 = scalar_lea.sflag [#allocation3], %s396
        %s398 = sand.u32 %s38, 1
        %s399 = smul.addr %s398, 24
        %s400 = scalar_lea.vmem [#allocation2], %s399
        // Predicated region
        $region69: #{tpu_custom_call.1} parent=67 // pred_check
          %p401 = pneg %p51
        $region70: #{tpu_custom_call.1} parent=67 // pred_check_branch
          %403 = sbr.rel (%p401) target = $region72
        $region71: #{tpu_custom_call.1} parent=67 // pred_region
          %405 = dma.done %s397, 384
        $region72: #{tpu_custom_call.1} parent=67 // pred_fallthru
          _
        // Predicated region
        $region73: #{tpu_custom_call.1} parent=67 // pred_check
          %p406 = pneg %p72
        $region74: #{tpu_custom_call.1} parent=67 // pred_check_branch
          %408 = sbr.rel (%p406) target = $region76
        $region75: #{tpu_custom_call.1} parent=67 // pred_region
          %410 = dma.done [#allocation6], 48
        $region76: #{tpu_custom_call.1} parent=67 // pred_fallthru
          _
        %s411 = sand.u32 %s38, 1
        %s412 = scalar_lea.sflag [#allocation3], %s411
        %s413 = sand.u32 %s38, 1
        %s414 = smul.addr %s413, 24
        %s415 = scalar_lea.vmem [#allocation2], %s414
        %p416 = pneg %p51
        %p417 = pneg %p48
        %p418 = pneg %p72
        %p419 = pneg %p69
        %p420 = pneg %p93
        %p421 = pneg %p90
        %p422 = pneg %p114
        %p423 = pneg %p111
        %p424 = pneg %p135
        %p425 = pneg %p132
        %p426 = pneg %p156
        %p427 = pneg %p153
        %p428 = pneg %p177
        %p429 = pneg %p174
        %p430 = pneg %p198
        %p431 = pneg %p195
        %p432 = pneg %p219
        %p433 = pneg %p216
        %p434 = pneg %p240
        %p435 = pneg %p237
        %p436 = pneg %p261
        %p437 = pneg %p258
        %p438 = pneg %p282
        %p439 = pneg %p279
        %p440 = pneg %p308
        %p441 = pneg %p305
        %s442 = sand.u32 %s295, 1
        %s443 = scalar_lea.sflag [#allocation4], %s442
        %s444 = sand.u32 %s295, 1
        %s445 = smul.addr %s444, 24
        %s446 = scalar_lea.vmem [#allocation7], %s445
        %v447 = vld [vmem:[%s400] sm:$0xff]
        %v448 = vld [vmem:[%s400 + $0x8] sm:$0xff]
        %v449 = vld [vmem:[%s400 + $0x10] sm:$0xff]
        %v450 = vld [vmem:[#allocation5] sm:$0x7]
        %v451 = vld [vmem:[%s2] sm:$0xff]
        %v452 = vld [vmem:[%s6] sm:$0xff]
        %453 = vrot.lane.b32.xlu0 %v447, 18
        %v454 = vpop.permute.xlu0 %453
        %455 = vrot.lane.b32.xlu0 %v448, 18
        %v456 = vpop.permute.xlu0 %455
        %457 = vrot.lane.b32.xlu0 %v449, 18
        %v458 = vpop.permute.xlu0 %457
        %v459 = vlaneseq
        %v460 = vand.u32 %v459, 127
        %vm461 = vcmp.lt.s32.totalorder %v460, 18
        %v462 = vsel %vm461, %v456, %v458
        %v463 = vsel %vm461, %v454, %v456
        %v464 = vsel %vm461, %v458, %v454
        %465 = vrot.lane.b32.xlu0 %v447, 110
        %v466 = vpop.permute.xlu0 %465
        %467 = vrot.lane.b32.xlu0 %v448, 110
        %v468 = vpop.permute.xlu0 %467
        %469 = vrot.lane.b32.xlu0 %v449, 110
        %v470 = vpop.permute.xlu0 %469
        %vm471 = vcmp.lt.s32.totalorder %v460, 110
        %v472 = vsel %vm471, %v468, %v470
        %v473 = vsel %vm471, %v466, %v468
        %v474 = vsel %vm471, %v470, %v466
        %476 = vset.pattern.permute.xlu0 0
        %477 = vperm.xlu0 %476, %v451
        %v478 = vpop.permute.xlu0 %477
        %v480 = vmul.f32 %v464, %v478
        %v481 = vmul.f32 %v463, %v478
        %v482 = vmul.f32 %v462, %v478
        %483 = vset.pattern.permute.xlu0 3
        %484 = vperm.xlu0 %483, %v451
        %v485 = vpop.permute.xlu0 %484
        %v487 = vmul.f32 %v447, %v485
        %v488 = vmul.f32 %v448, %v485
        %v489 = vmul.f32 %v449, %v485
        %v490 = vadd.f32 %v480, %v487
        %v491 = vadd.f32 %v481, %v488
        %v492 = vadd.f32 %v482, %v489
        %493 = vset.pattern.permute.xlu0 6
        %494 = vperm.xlu0 %493, %v451
        %v495 = vpop.permute.xlu0 %494
        %v497 = vmul.f32 %v473, %v495
        %v498 = vmul.f32 %v472, %v495
        %v499 = vmul.f32 %v474, %v495
        %v500 = vadd.f32 %v490, %v497
        %v501 = vadd.f32 %v491, %v498
        %v502 = vadd.f32 %v492, %v499
        %503 = vset.pattern.permute.xlu0 1
        %504 = vperm.xlu0 %503, %v451
        %v505 = vpop.permute.xlu0 %504
        %v507 = vmul.f32 %v464, %v505
        %v508 = vmul.f32 %v463, %v505
        %v509 = vmul.f32 %v462, %v505
        %510 = vset.pattern.permute.xlu0 4
        %511 = vperm.xlu0 %510, %v451
        %v512 = vpop.permute.xlu0 %511
        %v514 = vmul.f32 %v447, %v512
        %v515 = vmul.f32 %v448, %v512
        %v516 = vmul.f32 %v449, %v512
        %v517 = vadd.f32 %v507, %v514
        %v518 = vadd.f32 %v508, %v515
        %v519 = vadd.f32 %v509, %v516
        %520 = vset.pattern.permute.xlu0 7
        %521 = vperm.xlu0 %520, %v451
        %v522 = vpop.permute.xlu0 %521
        %v524 = vmul.f32 %v473, %v522
        %v525 = vmul.f32 %v472, %v522
        %v526 = vmul.f32 %v474, %v522
        %v527 = vadd.f32 %v517, %v524
        %v528 = vadd.f32 %v518, %v525
        %v529 = vadd.f32 %v519, %v526
        %530 = vset.pattern.permute.xlu0 2
        %531 = vperm.xlu0 %530, %v451
        %v532 = vpop.permute.xlu0 %531
        %v534 = vmul.f32 %v464, %v532
        %v535 = vmul.f32 %v463, %v532
        %v536 = vmul.f32 %v462, %v532
        %537 = vset.pattern.permute.xlu0 5
        %538 = vperm.xlu0 %537, %v451
        %v539 = vpop.permute.xlu0 %538
        %v541 = vmul.f32 %v447, %v539
        %v542 = vmul.f32 %v448, %v539
        %v543 = vmul.f32 %v449, %v539
        %v544 = vadd.f32 %v534, %v541
        %v545 = vadd.f32 %v535, %v542
        %v546 = vadd.f32 %v536, %v543
        %547 = vset.pattern.permute.xlu0 8
        %548 = vperm.xlu0 %547, %v451
        %v549 = vpop.permute.xlu0 %548
        %v551 = vmul.f32 %v473, %v549
        %v552 = vmul.f32 %v472, %v549
        %v553 = vmul.f32 %v474, %v549
        %v554 = vadd.f32 %v544, %v551
        %v555 = vadd.f32 %v545, %v552
        %v556 = vadd.f32 %v546, %v553
        %557 = vrot.lane.b32.xlu0 %v500, 1
        %v558 = vpop.permute.xlu0 %557
        %559 = vrot.lane.b32.xlu0 %v501, 1
        %v560 = vpop.permute.xlu0 %559
        %561 = vrot.lane.b32.xlu0 %v502, 1
        %v562 = vpop.permute.xlu0 %561
        %vm563 = vcmp.lt.s32.totalorder %v460, 1
        %v564 = vsel %vm563, %v560, %v562
        %v565 = vsel %vm563, %v558, %v560
        %v566 = vsel %vm563, %v562, %v558
        %v567 = vadd.f32 %v566, %v527
        %v568 = vadd.f32 %v565, %v528
        %v569 = vadd.f32 %v564, %v529
        %570 = vrot.lane.b32.xlu0 %v554, 127
        %v571 = vpop.permute.xlu0 %570
        %572 = vrot.lane.b32.xlu0 %v555, 127
        %v573 = vpop.permute.xlu0 %572
        %574 = vrot.lane.b32.xlu0 %v556, 127
        %v575 = vpop.permute.xlu0 %574
        %vm576 = vcmp.lt.s32.totalorder %v460, 127
        %v577 = vsel %vm576, %v573, %v575
        %v578 = vsel %vm576, %v571, %v573
        %v579 = vsel %vm576, %v575, %v571
        %v580 = vadd.f32 %v567, %v578
        %v581 = vadd.f32 %v568, %v577
        %v582 = vadd.f32 %v569, %v579
        %v583 = vld [vmem:[%s3] sm:$0xff]
        %585 = vset.pattern.permute.xlu0 0
        %586 = vperm.xlu0 %585, %v583
        %v587 = vpop.permute.xlu0 %586
        %v589 = vadd.f32 %v580, %v587
        %v590 = vadd.f32 %v581, %v587
        %v591 = vadd.f32 %v582, %v587
        %v592 = vmax.f32 %v589, 0.0
        %v593 = vmax.f32 %v590, 0.0
        %v594 = vmax.f32 %v591, 0.0
        %v595 = vld [vmem:[%s4] sm:$0xff]
        %v596 = vld [vmem:[%s5] sm:$0xff]
        %598 = vset.pattern.permute.xlu0 0
        %599 = vperm.xlu0 %598, %v596
        %v600 = vpop.permute.xlu0 %599
        %vm602 = vcmask 64512
        %v604 = vsel %vm602, %v595, 0
        %606 = vmatpush.msra.mxu0 0.0
        %607 = vmatpush.msra.mxu0 0.0
        %608 = vmatpush.msra.mxu0 0.0
        %609 = vmatpush.msra.mxu0 0.0
        %610 = vmatpush.msra.mxu0 0.0
        %611 = vmatpush.msra.mxu0 0.0
        %612 = vmatpush.msra.mxu0 0.0
        %613 = vmatpush.msra.mxu0 0.0
        %614 = vmatpush.msra.mxu0 0.0
        %615 = vmatpush.msra.mxu0 0.0
        %616 = vmatpush.msra.mxu0 0.0
        %617 = vmatpush.msra.mxu0 0.0
        %618 = vmatpush.msra.mxu0 0.0
        %619 = vmatpush.msra.mxu0 0.0
        %620 = vmatpush.msra.mxu0 0.0
        %621 = vmatpush.msra.mxu0 %v592
        %622 = vmatmul.f32.gmra.mxu0 %v604
        %v623 = vpop.f32.mrf.mxu0
        %v624 = vadd.f32 %v600, %v623
        %625 = vdwg.mxu0
        %626 = vmatpush.msra.mxu0 0.0
        %627 = vmatpush.msra.mxu0 0.0
        %628 = vmatpush.msra.mxu0 0.0
        %629 = vmatpush.msra.mxu0 0.0
        %630 = vmatpush.msra.mxu0 0.0
        %631 = vmatpush.msra.mxu0 0.0
        %632 = vmatpush.msra.mxu0 0.0
        %633 = vmatpush.msra.mxu0 0.0
        %634 = vmatpush.msra.mxu0 0.0
        %635 = vmatpush.msra.mxu0 0.0
        %636 = vmatpush.msra.mxu0 0.0
        %637 = vmatpush.msra.mxu0 0.0
        %638 = vmatpush.msra.mxu0 0.0
        %639 = vmatpush.msra.mxu0 0.0
        %640 = vmatpush.msra.mxu0 0.0
        %641 = vmatpush.msra.mxu0 %v593
        %642 = vmatmul.f32.gmra.mxu0 %v604
        %v643 = vpop.f32.mrf.mxu0
        %v644 = vadd.f32 %v600, %v643
        %645 = vdwg.mxu0
        %646 = vmatpush.msra.mxu0 0.0
        %647 = vmatpush.msra.mxu0 0.0
        %648 = vmatpush.msra.mxu0 0.0
        %649 = vmatpush.msra.mxu0 0.0
        %650 = vmatpush.msra.mxu0 0.0
        %651 = vmatpush.msra.mxu0 0.0
        %652 = vmatpush.msra.mxu0 0.0
        %653 = vmatpush.msra.mxu0 0.0
        %654 = vmatpush.msra.mxu0 0.0
        %655 = vmatpush.msra.mxu0 0.0
        %656 = vmatpush.msra.mxu0 0.0
        %657 = vmatpush.msra.mxu0 0.0
        %658 = vmatpush.msra.mxu0 0.0
        %659 = vmatpush.msra.mxu0 0.0
        %660 = vmatpush.msra.mxu0 0.0
        %661 = vmatpush.msra.mxu0 %v594
        %662 = vmatmul.f32.gmra.mxu0 %v604
        %v663 = vpop.f32.mrf.mxu0
        %v664 = vadd.f32 %v600, %v663
        %665 = vdwg.mxu0
        %v666 = vmax.f32 %v624, 0.0
        %v667 = vmax.f32 %v644, 0.0
        %v668 = vmax.f32 %v664, 0.0
        %v670 = vperm.slane %v450, 0
        %v671 = vperm.slane %v450, 1
        %v672 = vperm.slane %v450, 2
        %v676 = vmul.f32 %v666, %v670
        %v677 = vmul.f32 %v667, %v671
        %v678 = vmul.f32 %v668, %v672
        %679 = vrot.lane.b32.xlu0 %v676, 18
        %v680 = vpop.permute.xlu0 %679
        %681 = vrot.lane.b32.xlu0 %v677, 18
        %v682 = vpop.permute.xlu0 %681
        %683 = vrot.lane.b32.xlu0 %v678, 18
        %v684 = vpop.permute.xlu0 %683
        %v685 = vsel %vm461, %v682, %v684
        %v686 = vsel %vm461, %v680, %v682
        %v687 = vsel %vm461, %v684, %v680
        %688 = vrot.lane.b32.xlu0 %v676, 110
        %v689 = vpop.permute.xlu0 %688
        %690 = vrot.lane.b32.xlu0 %v677, 110
        %v691 = vpop.permute.xlu0 %690
        %692 = vrot.lane.b32.xlu0 %v678, 110
        %v693 = vpop.permute.xlu0 %692
        %v694 = vsel %vm471, %v691, %v693
        %v695 = vsel %vm471, %v689, %v691
        %v696 = vsel %vm471, %v693, %v689
        %698 = vset.pattern.permute.xlu0 0
        %699 = vperm.xlu0 %698, %v452
        %v700 = vpop.permute.xlu0 %699
        %v702 = vmul.f32 %v687, %v700
        %v703 = vmul.f32 %v686, %v700
        %v704 = vmul.f32 %v685, %v700
        %705 = vset.pattern.permute.xlu0 3
        %706 = vperm.xlu0 %705, %v452
        %v707 = vpop.permute.xlu0 %706
        %v709 = vmul.f32 %v676, %v707
        %v710 = vmul.f32 %v677, %v707
        %v711 = vmul.f32 %v678, %v707
        %v712 = vadd.f32 %v702, %v709
        %v713 = vadd.f32 %v703, %v710
        %v714 = vadd.f32 %v704, %v711
        %715 = vset.pattern.permute.xlu0 6
        %716 = vperm.xlu0 %715, %v452
        %v717 = vpop.permute.xlu0 %716
        %v719 = vmul.f32 %v695, %v717
        %v720 = vmul.f32 %v694, %v717
        %v721 = vmul.f32 %v696, %v717
        %v722 = vadd.f32 %v712, %v719
        %v723 = vadd.f32 %v713, %v720
        %v724 = vadd.f32 %v714, %v721
        %725 = vset.pattern.permute.xlu0 1
        %726 = vperm.xlu0 %725, %v452
        %v727 = vpop.permute.xlu0 %726
        %v729 = vmul.f32 %v687, %v727
        %v730 = vmul.f32 %v686, %v727
        %v731 = vmul.f32 %v685, %v727
        %732 = vset.pattern.permute.xlu0 4
        %733 = vperm.xlu0 %732, %v452
        %v734 = vpop.permute.xlu0 %733
        %v736 = vmul.f32 %v676, %v734
        %v737 = vmul.f32 %v677, %v734
        %v738 = vmul.f32 %v678, %v734
        %v739 = vadd.f32 %v729, %v736
        %v740 = vadd.f32 %v730, %v737
        %v741 = vadd.f32 %v731, %v738
        %742 = vset.pattern.permute.xlu0 7
        %743 = vperm.xlu0 %742, %v452
        %v744 = vpop.permute.xlu0 %743
        %v746 = vmul.f32 %v695, %v744
        %v747 = vmul.f32 %v694, %v744
        %v748 = vmul.f32 %v696, %v744
        %v749 = vadd.f32 %v739, %v746
        %v750 = vadd.f32 %v740, %v747
        %v751 = vadd.f32 %v741, %v748
        %752 = vset.pattern.permute.xlu0 2
        %753 = vperm.xlu0 %752, %v452
        %v754 = vpop.permute.xlu0 %753
        %v756 = vmul.f32 %v687, %v754
        %v757 = vmul.f32 %v686, %v754
        %v758 = vmul.f32 %v685, %v754
        %759 = vset.pattern.permute.xlu0 5
        %760 = vperm.xlu0 %759, %v452
        %v761 = vpop.permute.xlu0 %760
        %v763 = vmul.f32 %v676, %v761
        %v764 = vmul.f32 %v677, %v761
        %v765 = vmul.f32 %v678, %v761
        %v766 = vadd.f32 %v756, %v763
        %v767 = vadd.f32 %v757, %v764
        %v768 = vadd.f32 %v758, %v765
        %769 = vset.pattern.permute.xlu0 8
        %770 = vperm.xlu0 %769, %v452
        %v771 = vpop.permute.xlu0 %770
        %v773 = vmul.f32 %v695, %v771
        %v774 = vmul.f32 %v694, %v771
        %v775 = vmul.f32 %v696, %v771
        %v776 = vadd.f32 %v766, %v773
        %v777 = vadd.f32 %v767, %v774
        %v778 = vadd.f32 %v768, %v775
        %779 = vrot.lane.b32.xlu0 %v722, 1
        %v780 = vpop.permute.xlu0 %779
        %781 = vrot.lane.b32.xlu0 %v723, 1
        %v782 = vpop.permute.xlu0 %781
        %783 = vrot.lane.b32.xlu0 %v724, 1
        %v784 = vpop.permute.xlu0 %783
        %v785 = vsel %vm563, %v782, %v784
        %v786 = vsel %vm563, %v780, %v782
        %v787 = vsel %vm563, %v784, %v780
        %v788 = vadd.f32 %v787, %v749
        %v789 = vadd.f32 %v786, %v750
        %v790 = vadd.f32 %v785, %v751
        %791 = vrot.lane.b32.xlu0 %v776, 127
        %v792 = vpop.permute.xlu0 %791
        %793 = vrot.lane.b32.xlu0 %v777, 127
        %v794 = vpop.permute.xlu0 %793
        %795 = vrot.lane.b32.xlu0 %v778, 127
        %v796 = vpop.permute.xlu0 %795
        %v797 = vsel %vm576, %v794, %v796
        %v798 = vsel %vm576, %v792, %v794
        %v799 = vsel %vm576, %v796, %v792
        %v800 = vadd.f32 %v788, %v798
        %v801 = vadd.f32 %v789, %v797
        %v802 = vadd.f32 %v790, %v799
        %v803 = vld [vmem:[%s7] sm:$0xff]
        %805 = vset.pattern.permute.xlu0 0
        %806 = vperm.xlu0 %805, %v803
        %v807 = vpop.permute.xlu0 %806
        %v809 = vadd.f32 %v800, %v807
        %v810 = vadd.f32 %v801, %v807
        %v811 = vadd.f32 %v802, %v807
        %v812 = vmax.f32 %v809, 0.0
        %v813 = vmax.f32 %v810, 0.0
        %v814 = vmax.f32 %v811, 0.0
        %v815 = vld [vmem:[%s8] sm:$0xff]
        %v816 = vld [vmem:[%s9] sm:$0xff]
        %818 = vset.pattern.permute.xlu0 0
        %819 = vperm.xlu0 %818, %v816
        %v820 = vpop.permute.xlu0 %819
        %v823 = vsel %vm602, %v815, 0
        %825 = vmatpush.msra.mxu0 0.0
        %826 = vmatpush.msra.mxu0 0.0
        %827 = vmatpush.msra.mxu0 0.0
        %828 = vmatpush.msra.mxu0 0.0
        %829 = vmatpush.msra.mxu0 0.0
        %830 = vmatpush.msra.mxu0 0.0
        %831 = vmatpush.msra.mxu0 0.0
        %832 = vmatpush.msra.mxu0 0.0
        %833 = vmatpush.msra.mxu0 0.0
        %834 = vmatpush.msra.mxu0 0.0
        %835 = vmatpush.msra.mxu0 0.0
        %836 = vmatpush.msra.mxu0 0.0
        %837 = vmatpush.msra.mxu0 0.0
        %838 = vmatpush.msra.mxu0 0.0
        %839 = vmatpush.msra.mxu0 0.0
        %840 = vmatpush.msra.mxu0 %v812
        %841 = vmatmul.f32.gmra.mxu0 %v823
        %v842 = vpop.f32.mrf.mxu0
        %v843 = vadd.f32 %v820, %v842
        %844 = vdwg.mxu0
        %845 = vmatpush.msra.mxu0 0.0
        %846 = vmatpush.msra.mxu0 0.0
        %847 = vmatpush.msra.mxu0 0.0
        %848 = vmatpush.msra.mxu0 0.0
        %849 = vmatpush.msra.mxu0 0.0
        %850 = vmatpush.msra.mxu0 0.0
        %851 = vmatpush.msra.mxu0 0.0
        %852 = vmatpush.msra.mxu0 0.0
        %853 = vmatpush.msra.mxu0 0.0
        %854 = vmatpush.msra.mxu0 0.0
        %855 = vmatpush.msra.mxu0 0.0
        %856 = vmatpush.msra.mxu0 0.0
        %857 = vmatpush.msra.mxu0 0.0
        %858 = vmatpush.msra.mxu0 0.0
        %859 = vmatpush.msra.mxu0 0.0
        %860 = vmatpush.msra.mxu0 %v813
        %861 = vmatmul.f32.gmra.mxu0 %v823
        %v862 = vpop.f32.mrf.mxu0
        %v863 = vadd.f32 %v820, %v862
        %864 = vdwg.mxu0
        %865 = vmatpush.msra.mxu0 0.0
        %866 = vmatpush.msra.mxu0 0.0
        %867 = vmatpush.msra.mxu0 0.0
        %868 = vmatpush.msra.mxu0 0.0
        %869 = vmatpush.msra.mxu0 0.0
        %870 = vmatpush.msra.mxu0 0.0
        %871 = vmatpush.msra.mxu0 0.0
        %872 = vmatpush.msra.mxu0 0.0
        %873 = vmatpush.msra.mxu0 0.0
        %874 = vmatpush.msra.mxu0 0.0
        %875 = vmatpush.msra.mxu0 0.0
        %876 = vmatpush.msra.mxu0 0.0
        %877 = vmatpush.msra.mxu0 0.0
        %878 = vmatpush.msra.mxu0 0.0
        %879 = vmatpush.msra.mxu0 0.0
        %880 = vmatpush.msra.mxu0 %v814
        %881 = vmatmul.f32.gmra.mxu0 %v823
        %v882 = vpop.f32.mrf.mxu0
        %v883 = vadd.f32 %v820, %v882
        %884 = vdwg.mxu0
        %v885 = vmax.f32 %v843, 0.0
        %v886 = vmax.f32 %v863, 0.0
        %v887 = vmax.f32 %v883, 0.0
        %v888 = vld [vmem:[%s10] sm:$0xff]
        %v889 = vld [vmem:[%s11] sm:$0xff]
        %891 = vset.pattern.permute.xlu0 0
        %892 = vperm.xlu0 %891, %v889
        %v893 = vpop.permute.xlu0 %892
        %v896 = vsel %vm602, %v888, 0
        %898 = vmatpush.msra.mxu0 0.0
        %899 = vmatpush.msra.mxu0 0.0
        %900 = vmatpush.msra.mxu0 0.0
        %901 = vmatpush.msra.mxu0 0.0
        %902 = vmatpush.msra.mxu0 0.0
        %903 = vmatpush.msra.mxu0 0.0
        %904 = vmatpush.msra.mxu0 0.0
        %905 = vmatpush.msra.mxu0 0.0
        %906 = vmatpush.msra.mxu0 0.0
        %907 = vmatpush.msra.mxu0 0.0
        %908 = vmatpush.msra.mxu0 0.0
        %909 = vmatpush.msra.mxu0 0.0
        %910 = vmatpush.msra.mxu0 0.0
        %911 = vmatpush.msra.mxu0 0.0
        %912 = vmatpush.msra.mxu0 0.0
        %913 = vmatpush.msra.mxu0 %v885
        %914 = vmatmul.f32.gmra.mxu0 %v896
        %v915 = vpop.f32.mrf.mxu0
        %v916 = vadd.f32 %v893, %v915
        %917 = vdwg.mxu0
        %918 = vmatpush.msra.mxu0 0.0
        %919 = vmatpush.msra.mxu0 0.0
        %920 = vmatpush.msra.mxu0 0.0
        %921 = vmatpush.msra.mxu0 0.0
        %922 = vmatpush.msra.mxu0 0.0
        %923 = vmatpush.msra.mxu0 0.0
        %924 = vmatpush.msra.mxu0 0.0
        %925 = vmatpush.msra.mxu0 0.0
        %926 = vmatpush.msra.mxu0 0.0
        %927 = vmatpush.msra.mxu0 0.0
        %928 = vmatpush.msra.mxu0 0.0
        %929 = vmatpush.msra.mxu0 0.0
        %930 = vmatpush.msra.mxu0 0.0
        %931 = vmatpush.msra.mxu0 0.0
        %932 = vmatpush.msra.mxu0 0.0
        %933 = vmatpush.msra.mxu0 %v886
        %934 = vmatmul.f32.gmra.mxu0 %v896
        %v935 = vpop.f32.mrf.mxu0
        %v936 = vadd.f32 %v893, %v935
        %937 = vdwg.mxu0
        %938 = vmatpush.msra.mxu0 0.0
        %939 = vmatpush.msra.mxu0 0.0
        %940 = vmatpush.msra.mxu0 0.0
        %941 = vmatpush.msra.mxu0 0.0
        %942 = vmatpush.msra.mxu0 0.0
        %943 = vmatpush.msra.mxu0 0.0
        %944 = vmatpush.msra.mxu0 0.0
        %945 = vmatpush.msra.mxu0 0.0
        %946 = vmatpush.msra.mxu0 0.0
        %947 = vmatpush.msra.mxu0 0.0
        %948 = vmatpush.msra.mxu0 0.0
        %949 = vmatpush.msra.mxu0 0.0
        %950 = vmatpush.msra.mxu0 0.0
        %951 = vmatpush.msra.mxu0 0.0
        %952 = vmatpush.msra.mxu0 0.0
        %953 = vmatpush.msra.mxu0 %v887
        %954 = vmatmul.f32.gmra.mxu0 %v896
        %v955 = vpop.f32.mrf.mxu0
        %v956 = vadd.f32 %v893, %v955
        %957 = vdwg.mxu0
        %958 = vst [vmem:[%s446] sm:$0xff] %v916
        %959 = vst [vmem:[%s446 + $0x8] sm:$0xff] %v936
        %960 = vst [vmem:[%s446 + $0x10] sm:$0xff] %v956
        %s961 = sand.u32 %s295, 1
        %s962 = scalar_lea.sflag [#allocation4], %s961
        %s963 = sand.u32 %s295, 1
        %s964 = smul.addr %s963, 24
        %s965 = scalar_lea.vmem [#allocation7], %s964
        // Predicated region
        $region77: #{tpu_custom_call.1} parent=67 // pred_check
          %p966 = pneg %p305
        $region78: #{tpu_custom_call.1} parent=67 // pred_check_branch
          %968 = sbr.rel (%p966) target = $region80
        $region79: #{tpu_custom_call.1} parent=67 // pred_region
          %970 = vsyncadd %s962, 0
          %s971 = smul.addr %s30, 3
          %s972 = smul.addr %s971, 8
          %s973 = scalar_lea.hbm %s12, %s972
          %s975 = sshll.u32 %s965, 4
          %s976 = int_to_ptr.vmem [resolvable:$true] %s975
          %s977 = sshll.u32 %s973, 4
          %s978 = int_to_ptr.hbm [resolvable:$true] %s977
          %980 = dma.vmem_to_hbm [thread:$0]  %s976, 384, %s978, %s962
        $region80: #{tpu_custom_call.1} parent=67 // pred_fallthru
          _
      $region68: #{tpu_custom_call.1} parent=5 // pred_fallthru
        _
      %p981 = scmp.le.s32.totalorder 2, %s25
      // Predicated region
      $region81: #{tpu_custom_call.1} parent=5 // pred_check
        %p982 = pneg %p981
      $region82: #{tpu_custom_call.1} parent=5 // pred_check_branch
        %984 = sbr.rel (%p982) target = $region84
      $region83: #{tpu_custom_call.1} parent=5 // pred_region
        %s985 = ssub.s32 %s25, 2
        // Predicated region
        $region85: #{tpu_custom_call.1} parent=83 // pred_check
          %p986 = pneg %p311
        $region86: #{tpu_custom_call.1} parent=83 // pred_check_branch
          %988 = sbr.rel (%p986) target = $region88
        $region87: #{tpu_custom_call.1} parent=83 // pred_region
          %s989 = sand.u32 %s296, 1
          %s990 = scalar_lea.sflag [#allocation4], %s989
          %s991 = sand.u32 %s296, 1
          %s992 = smul.addr %s991, 24
          %s993 = scalar_lea.vmem [#allocation7], %s992
          %995 = dma.done %s990, 384
        $region88: #{tpu_custom_call.1} parent=83 // pred_fallthru
          _
      $region84: #{tpu_custom_call.1} parent=5 // pred_fallthru
        _
    $region6: #{tpu_custom_call.1} parent=1 // loop_footer
      %s29 = sadd.s32 1, %s25
    $region7: #{tpu_custom_call.1} parent=1 // loop_footer_branch
      %24 = sbr.rel target = $region3
    $region8: #{tpu_custom_call.1} parent=1 // loop_exit
      _
    %996 = vsyncpa [#allocation3], 1
    %s997 = scalar_lea.sflag [#allocation3], 1
    %998 = vsyncpa %s997, 1
    %999 = vsyncpa [#allocation6], 1
    %1000 = vsyncpa [#allocation4], 1
    %s1001 = scalar_lea.sflag [#allocation4], 1
    %1002 = vsyncpa %s1001, 1

</llo_original>
